<compile_context>
chip_gen: v7x
topology: tpu7x:2x2x1
jax: 0.10.0
libtpu: 0.0.40
codegen_flags: <defaults>
</compile_context>

<pallas_src>
import functools

import jax
import jax.numpy as jnp
from jax.experimental import pallas as pl
from jax.experimental.pallas import tpu as pltpu

_LN_EPS = 1e-5


@functools.lru_cache(maxsize=None)
def _vmem_limit_bytes():
    """Per-chip VMEM limit (~85% of physical), instead of a hard-coded guess."""
    try:
        cap = int(pltpu.get_tpu_info().vmem_capacity_bytes)
    except Exception:
        cap = 64 * 1024 * 1024  # conservative fallback (v7x physical VMEM)
    return max(32 * 1024 * 1024, int(cap * 0.85))


def _choose_row_tile(n_rows, max_rows):
    """Largest multiple-of-8 divisor of n_rows that is <= max_rows; else full n_rows.

    Block shapes must have their last two dims divisible by (8, 128) or equal to the
    full array dim, so anything else falls back to the full dimension (always legal).
    """
    if n_rows <= max_rows:
        return n_rows
    start = max_rows - (max_rows % 8)
    for t in range(start, 7, -8):
        if n_rows % t == 0:
            return t
    return n_rows


# ---------------------------------------------------------------------------
# Kernel A: fused K and V projections  (k_out = k_in @ Wk + bk ; v_out = v_in @ Wv + bv)
# ---------------------------------------------------------------------------
def _kv_projection_kernel(k_in_ref, v_in_ref, wk_ref, bk_ref, wv_ref, bv_ref,
                          k_out_ref, v_out_ref, *, compute_dtype):
    k_in = k_in_ref[0].astype(compute_dtype)                      # (tl, D)
    v_in = v_in_ref[0].astype(compute_dtype)                      # (tl, D)
    k = jnp.dot(k_in, wk_ref[...], preferred_element_type=jnp.float32) + bk_ref[...]
    v = jnp.dot(v_in, wv_ref[...], preferred_element_type=jnp.float32) + bv_ref[...]
    k_out_ref[0] = k.astype(k_out_ref.dtype)
    v_out_ref[0] = v.astype(v_out_ref.dtype)


def fused_kv_projection(key, value, wk, bk, wv, bv, compute_dtype):
    B, Lk, D = key.shape
    tl = _choose_row_tile(Lk, max_rows=1024)
    kern = functools.partial(_kv_projection_kernel, compute_dtype=compute_dtype)
    return pl.pallas_call(
        kern,
        out_shape=(jax.ShapeDtypeStruct((B, Lk, D), compute_dtype),
                   jax.ShapeDtypeStruct((B, Lk, D), compute_dtype)),
        grid=(B, Lk // tl),
        in_specs=[
            pl.BlockSpec((1, tl, D), lambda b, i: (b, i, 0)),
            pl.BlockSpec((1, tl, D), lambda b, i: (b, i, 0)),
            pl.BlockSpec((D, D), lambda b, i: (0, 0)),            # Wk (resident)
            pl.BlockSpec((1, D), lambda b, i: (0, 0)),            # bk
            pl.BlockSpec((D, D), lambda b, i: (0, 0)),            # Wv (resident)
            pl.BlockSpec((1, D), lambda b, i: (0, 0)),            # bv
        ],
        out_specs=(
            pl.BlockSpec((1, tl, D), lambda b, i: (b, i, 0)),
            pl.BlockSpec((1, tl, D), lambda b, i: (b, i, 0)),
        ),
        compiler_params=pltpu.CompilerParams(
            dimension_semantics=("parallel", "parallel"),
            vmem_limit_bytes=_vmem_limit_bytes()),
    )(key, value, wk, bk, wv, bv)


# ---------------------------------------------------------------------------
# Kernel B: Q projection + attention (all heads) + output projection + residual + LN
# ---------------------------------------------------------------------------
def _fused_attention_kernel(q_in_ref, k_ref, v_ref, wq_ref, bq_ref, wf_ref, bf_ref,
                            gamma_ref, beta_ref, out_ref, *attn_refs,
                            scale, num_heads, dim_per_head, eps, compute_dtype):
    attn_ref = attn_refs[0] if attn_refs else None
    dh = dim_per_head

    q_in = q_in_ref[0]                                            # (tq, D) f32, also residual
    tq, D = q_in.shape

    # Q projection: one full-width (tq, D) @ (D, D) matmul (f32 accumulation);
    # softmax scale folded into Q (O(tq*D) multiplies instead of O(tq*Lk)).
    q2 = jnp.dot(q_in.astype(compute_dtype), wq_ref[...],
                 preferred_element_type=jnp.float32)
    q2 = ((q2 + bq_ref[...]) * scale).astype(compute_dtype)       # (tq, D)

    k = k_ref[0]                                                  # (Lk, D) storage dtype
    v = v_ref[0]                                                  # (Lk, D)
    wf = wf_ref[...]                                              # (D, D) compute dtype

    # Per-head attention over lane slices of the D-minor tiles; the output projection
    # is accumulated per head so no (H, tq, D) intermediate ever materializes.
    # TODO(synk): attn_mask (masked_fill_ with -inf) path not wired.
    out_acc = jnp.zeros((tq, D), jnp.float32)
    for h in range(num_heads):
        sl = slice(h * dh, (h + 1) * dh)
        # scores_h = Q_h @ K_h^T without an explicit K transpose (contract last dims).
        scores = jax.lax.dot_general(
            q2[:, sl], k[:, sl],
            dimension_numbers=(((1,), (1,)), ((), ())),
            preferred_element_type=jnp.float32)                   # (tq, Lk)
        m = jnp.max(scores, axis=-1, keepdims=True)
        e = jnp.exp(scores - m)                                   # softmax math stays f32
        attn = e * pl.reciprocal(jnp.sum(e, axis=-1, keepdims=True), approx=True)
        if attn_ref is not None:
            attn_ref[0, h] = attn
        ctx = jnp.dot(attn.astype(compute_dtype), v[:, sl],
                      preferred_element_type=jnp.float32)         # (tq, dh)
        out_acc = out_acc + jnp.dot(ctx.astype(compute_dtype), wf[sl, :],
                                    preferred_element_type=jnp.float32)
    out = out_acc + bf_ref[...]                                   # (tq, D)

    # Fused epilogue: dropout (p=0 / eval) == identity, residual add + LayerNorm (f32).
    y = q_in + out
    mean = jnp.mean(y, axis=-1, keepdims=True)
    var = jnp.mean((y - mean) ** 2, axis=-1, keepdims=True)
    out_ref[0] = (y - mean) * jax.lax.rsqrt(var + eps) * gamma_ref[...] + beta_ref[...]


# ---------------------------------------------------------------------------
# MultiHeadAttention forward
# ---------------------------------------------------------------------------
def multi_head_attention(params, key, value, query, num_heads, attn_mask=None,
                         need_weights=True, compute_dtype=jnp.bfloat16):
    if attn_mask is not None:
        # TODO(synk): masked attention not implemented; fail loudly instead of silently.
        raise NotImplementedError("attn_mask is not supported by this Pallas kernel")

    query = query.astype(jnp.float32)                   # residual / LayerNorm math in f32
    B, Lq, D = query.shape
    assert key.shape[0] == B and value.shape[0] == B
    assert key.shape[2] == D and value.shape[2] == D
    assert key.shape[1] == value.shape[1], "key/value sequence lengths must match"
    assert D % num_heads == 0
    Lk = key.shape[1]
    dim_per_head = D // num_heads

    # Matches the PyTorch module exactly: scale = (key.size(-1) // num_heads) ** (-0.5)
    # where key.size(-1) after split_heads is dim_per_head.  (This intentionally
    # mirrors the reference module, not the textbook 1/sqrt(dim_per_head).)
    scale = float((dim_per_head // num_heads) ** (-0.5))

    # Cast matmul weights once at the call boundary; biases / LN params stay f32.
    cd = compute_dtype
    wk = params["wk"].astype(cd)
    wv = params["wv"].astype(cd)
    wq = params["wq"].astype(cd)
    wf = params["wf"].astype(cd)

    # ---- Kernel A: fused K / V projections (stay in [B, Lk, D] lane-dense layout) ----
    k_proj, v_proj = fused_kv_projection(
        key, value, wk, params["bk"], wv, params["bv"], compute_dtype=cd)

    # ---- Kernel B: Q proj + attention + output proj + residual + LayerNorm ----
    tq = _choose_row_tile(Lq, max_rows=512)
    # v7x has 2 TensorCores: ensure the "parallel" grid has >= 2 steps when B == 1.
    if B == 1 and Lq // tq < 2 and Lq >= 16:
        smaller = _choose_row_tile(Lq, max_rows=Lq // 2)
        if smaller < Lq:
            tq = smaller

    kern = functools.partial(
        _fused_attention_kernel, scale=scale, num_heads=num_heads,
        dim_per_head=dim_per_head, eps=_LN_EPS, compute_dtype=cd)

    out_spec = pl.BlockSpec((1, tq, D), lambda b, i: (b, i, 0))
    if need_weights:
        out_shape = (jax.ShapeDtypeStruct((B, Lq, D), jnp.float32),
                     jax.ShapeDtypeStruct((B, num_heads, Lq, Lk), jnp.float32))
        out_specs = (out_spec,
                     pl.BlockSpec((1, num_heads, tq, Lk), lambda b, i: (b, 0, i, 0)))
    else:
        out_shape = jax.ShapeDtypeStruct((B, Lq, D), jnp.float32)
        out_specs = out_spec

    results = pl.pallas_call(
        kern,
        out_shape=out_shape,
        grid=(B, Lq // tq),
        in_specs=[
            pl.BlockSpec((1, tq, D), lambda b, i: (b, i, 0)),     # raw query tile
            pl.BlockSpec((1, Lk, D), lambda b, i: (b, 0, 0)),     # projected K (per batch)
            pl.BlockSpec((1, Lk, D), lambda b, i: (b, 0, 0)),     # projected V (per batch)
            pl.BlockSpec((D, D), lambda b, i: (0, 0)),            # Wq (resident, un-split)
            pl.BlockSpec((1, D), lambda b, i: (0, 0)),            # bq
            pl.BlockSpec((D, D), lambda b, i: (0, 0)),            # Wf (resident, un-split)
            pl.BlockSpec((1, D), lambda b, i: (0, 0)),            # bf
            pl.BlockSpec((1, D), lambda b, i: (0, 0)),            # gamma
            pl.BlockSpec((1, D), lambda b, i: (0, 0)),            # beta
        ],
        out_specs=out_specs,
        compiler_params=pltpu.CompilerParams(
            dimension_semantics=("parallel", "parallel"),
            vmem_limit_bytes=_vmem_limit_bytes()),
    )(query, k_proj, v_proj, wq, params["bq"], wf, params["bf"],
      params["gamma"], params["beta"])

    if need_weights:
        output, attention = results
    else:
        output, attention = results, None

    if output.shape[1] == 1:                                      # torch.squeeze(output, 1)
        output = jnp.squeeze(output, axis=1)
    return output, attention


# ---------------------------------------------------------------------------
# Pure-JAX reference (for correctness check)
# ---------------------------------------------------------------------------
def reference(params, key, value, query, num_heads):
    B, Lq, D = query.shape
    dh = D // num_heads
    residual = query
    k = key @ params["wk"] + params["bk"][0]
    v = value @ params["wv"] + params["bv"][0]
    q = query @ params["wq"] + params["bq"][0]
    sh = lambda x: jnp.transpose(x.reshape(B, -1, num_heads, dh), (0, 2, 1, 3))
    q, k, v = sh(q), sh(k), sh(v)
    scale = (dh // num_heads) ** (-0.5)
    scores = jnp.einsum("bhqd,bhkd->bhqk", q, k) * scale
    attn = jax.nn.softmax(scores, axis=-1)
    ctx = jnp.einsum("bhqk,bhkd->bhqd", attn, v)
    ctx = jnp.transpose(ctx, (0, 2, 1, 3)).reshape(B, -1, D)
    out = ctx @ params["wf"] + params["bf"][0]
    y = residual + out
    mean = jnp.mean(y, axis=-1, keepdims=True)
    var = jnp.mean((y - mean) ** 2, axis=-1, keepdims=True)
    out = (y - mean) / jnp.sqrt(var + 1e-5) * params["gamma"][0] + params["beta"][0]
    if out.shape[1] == 1:
        out = jnp.squeeze(out, axis=1)
    return out, attn


if __name__ == "__main__":
    B, L, model_dim, num_heads = 2, 8, 32, 2          # dim_per_head = 16

    root = jax.random.PRNGKey(0)
    ks = jax.random.split(root, 12)
    s = 0.1
    params = {
        "wk": jax.random.normal(ks[0], (model_dim, model_dim), jnp.float32) * s,
        "bk": jax.random.normal(ks[1], (1, model_dim), jnp.float32) * s,
        "wv": jax.random.normal(ks[2], (model_dim, model_dim), jnp.float32) * s,
        "bv": jax.random.normal(ks[3], (1, model_dim), jnp.float32) * s,
        "wq": jax.random.normal(ks[4], (model_dim, model_dim), jnp.float32) * s,
        "bq": jax.random.normal(ks[5], (1, model_dim), jnp.float32) * s,
        "wf": jax.random.normal(ks[6], (model_dim, model_dim), jnp.float32) * s,
        "bf": jax.random.normal(ks[7], (1, model_dim), jnp.float32) * s,
        "gamma": jnp.ones((1, model_dim), jnp.float32),
        "beta": jnp.zeros((1, model_dim), jnp.float32),
    }

    key_in = jax.random.normal(ks[8], (B, L, model_dim), jnp.float32)
    value_in = jax.random.normal(ks[9], (B, L, model_dim), jnp.float32)
    query_in = jax.random.normal(ks[10], (B, L, model_dim), jnp.float32)

    ref_out, ref_attn = reference(params, key_in, value_in, query_in, num_heads)

    # 1) f32 path (tight numerical check, full semantics: output + attention weights).
    out32, attn32 = multi_head_attention(params, key_in, value_in, query_in, num_heads,
                                         compute_dtype=jnp.float32)
    out32 = jax.block_until_ready(out32)
    attn32 = jax.block_until_ready(attn32)
    assert jnp.allclose(out32, ref_out, atol=2e-3, rtol=2e-3)
    assert jnp.allclose(attn32, ref_attn, atol=2e-3, rtol=2e-3)

    # 2) default bf16 storage/compute path (MXU peak dtype, half the K/V HBM traffic).
    out_bf, attn_bf = multi_head_attention(params, key_in, value_in, query_in, num_heads)
    out_bf = jax.block_until_ready(out_bf)
    attn_bf = jax.block_until_ready(attn_bf)
    assert jnp.allclose(out_bf, ref_out, atol=3e-2, rtol=3e-2)
    assert jnp.allclose(attn_bf, ref_attn, atol=3e-2, rtol=3e-2)

    # 3) hot path: skip materializing the O(B*H*L^2) attention-weights output.
    out_fast, attn_fast = multi_head_attention(
        params, key_in, value_in, query_in, num_heads, need_weights=False)
    out_fast = jax.block_until_ready(out_fast)
    assert attn_fast is None
    assert jnp.allclose(out_fast, ref_out, atol=3e-2, rtol=3e-2)

    print("KERNEL_OK")
</pallas_src>

<mosaic_0001>
module attributes {stable_mosaic.version = 11 : i64} {
  func.func @_kv_projection_kernel(%arg0: i32, %arg1: i32, %arg2: memref<1x8x32xf32, #tpu.memory_space<vmem>>, %arg3: memref<1x8x32xf32, #tpu.memory_space<vmem>>, %arg4: memref<32x32xf32, #tpu.memory_space<vmem>>, %arg5: memref<1x32xf32, #tpu.memory_space<vmem>>, %arg6: memref<32x32xf32, #tpu.memory_space<vmem>>, %arg7: memref<1x32xf32, #tpu.memory_space<vmem>>, %arg8: memref<1x8x32xf32, #tpu.memory_space<vmem>>, %arg9: memref<1x8x32xf32, #tpu.memory_space<vmem>>) attributes {dimension_semantics = [#tpu.dimension_semantics<parallel>, #tpu.dimension_semantics<parallel>], iteration_bounds = array<i64: 2, 1>, scalar_prefetch = 0 : i64, scratch_operands = 0 : i64, tpu.core_type = #tpu.core_type<tc>, window_params = [{transform_indices = @transform_0, window_bounds = array<i64: 1, 8, 32>}, {transform_indices = @transform_1, window_bounds = array<i64: 1, 8, 32>}, {pipeline_mode = #tpu.pipeline_mode<synchronous>, transform_indices = @transform_2, window_bounds = array<i64: 32, 32>}, {pipeline_mode = #tpu.pipeline_mode<synchronous>, transform_indices = @transform_3, window_bounds = array<i64: 1, 32>}, {pipeline_mode = #tpu.pipeline_mode<synchronous>, transform_indices = @transform_4, window_bounds = array<i64: 32, 32>}, {pipeline_mode = #tpu.pipeline_mode<synchronous>, transform_indices = @transform_5, window_bounds = array<i64: 1, 32>}, {transform_indices = @transform_6, window_bounds = array<i64: 1, 8, 32>}, {transform_indices = @transform_7, window_bounds = array<i64: 1, 8, 32>}]} {
    %c0 = arith.constant 0 : index
    %c0_0 = arith.constant 0 : index
    %c0_1 = arith.constant 0 : index
    %0 = vector.load %arg2[%c0, %c0_0, %c0_1] : memref<1x8x32xf32, #tpu.memory_space<vmem>>, vector<1x8x32xf32>
    %1 = vector.shape_cast %0 : vector<1x8x32xf32> to vector<8x32xf32>
    %c0_2 = arith.constant 0 : index
    %c0_3 = arith.constant 0 : index
    %c0_4 = arith.constant 0 : index
    %2 = vector.load %arg3[%c0_2, %c0_3, %c0_4] : memref<1x8x32xf32, #tpu.memory_space<vmem>>, vector<1x8x32xf32>
    %3 = vector.shape_cast %2 : vector<1x8x32xf32> to vector<8x32xf32>
    %c0_5 = arith.constant 0 : index
    %c0_6 = arith.constant 0 : index
    %4 = vector.load %arg4[%c0_5, %c0_6] : memref<32x32xf32, #tpu.memory_space<vmem>>, vector<32x32xf32>
    %cst = arith.constant dense<0.000000e+00> : vector<8x32xf32>
    %5 = tpu.matmul %1, %4, %cst {dimension_numbers = #tpu.dot_dimension_numbers<[1], [0], [0], [1], [0, 0, 1, 1], [], []>} : vector<8x32xf32>, vector<32x32xf32>, vector<8x32xf32> -> vector<8x32xf32>
    %c0_7 = arith.constant 0 : index
    %c0_8 = arith.constant 0 : index
    %6 = vector.load %arg5[%c0_7, %c0_8] : memref<1x32xf32, #tpu.memory_space<vmem>>, vector<1x32xf32>
    %7 = vector.broadcast %6 : vector<1x32xf32> to vector<8x32xf32>
    %8 = arith.addf %5, %7 : vector<8x32xf32>
    %c0_9 = arith.constant 0 : index
    %c0_10 = arith.constant 0 : index
    %9 = vector.load %arg6[%c0_9, %c0_10] : memref<32x32xf32, #tpu.memory_space<vmem>>, vector<32x32xf32>
    %cst_11 = arith.constant dense<0.000000e+00> : vector<8x32xf32>
    %10 = tpu.matmul %3, %9, %cst_11 {dimension_numbers = #tpu.dot_dimension_numbers<[1], [0], [0], [1], [0, 0, 1, 1], [], []>} : vector<8x32xf32>, vector<32x32xf32>, vector<8x32xf32> -> vector<8x32xf32>
    %c0_12 = arith.constant 0 : index
    %c0_13 = arith.constant 0 : index
    %11 = vector.load %arg7[%c0_12, %c0_13] : memref<1x32xf32, #tpu.memory_space<vmem>>, vector<1x32xf32>
    %12 = vector.broadcast %11 : vector<1x32xf32> to vector<8x32xf32>
    %13 = arith.addf %10, %12 : vector<8x32xf32>
    %c0_14 = arith.constant 0 : index
    %c0_15 = arith.constant 0 : index
    %c0_16 = arith.constant 0 : index
    %14 = vector.load %arg8[%c0_14, %c0_15, %c0_16] : memref<1x8x32xf32, #tpu.memory_space<vmem>>, vector<1x8x32xf32>
    %15 = vector.shape_cast %14 : vector<1x8x32xf32> to vector<8x32xf32>
    %16 = vector.shape_cast %8 : vector<8x32xf32> to vector<1x8x32xf32>
    tpu.vector_store %arg8[%c0_14, %c0_15, %c0_16], %16 {strides = array<i32>} : memref<1x8x32xf32, #tpu.memory_space<vmem>>, vector<1x8x32xf32>,
    %c0_17 = arith.constant 0 : index
    %c0_18 = arith.constant 0 : index
    %c0_19 = arith.constant 0 : index
    %17 = vector.load %arg9[%c0_17, %c0_18, %c0_19] : memref<1x8x32xf32, #tpu.memory_space<vmem>>, vector<1x8x32xf32>
    %18 = vector.shape_cast %17 : vector<1x8x32xf32> to vector<8x32xf32>
    %19 = vector.shape_cast %13 : vector<8x32xf32> to vector<1x8x32xf32>
    tpu.vector_store %arg9[%c0_17, %c0_18, %c0_19], %19 {strides = array<i32>} : memref<1x8x32xf32, #tpu.memory_space<vmem>>, vector<1x8x32xf32>,
    return
  }
  func.func @transform_0(%arg0: i32, %arg1: i32) -> (i32, i32, i32) {
    %c0_i32 = arith.constant 0 : i32
    %c0_i32_0 = arith.constant 0 : i32
    return %arg0, %arg1, %c0_i32 : i32, i32, i32
  }
  func.func @transform_1(%arg0: i32, %arg1: i32) -> (i32, i32, i32) {
    %c0_i32 = arith.constant 0 : i32
    %c0_i32_0 = arith.constant 0 : i32
    return %arg0, %arg1, %c0_i32 : i32, i32, i32
  }
  func.func @transform_2(%arg0: i32, %arg1: i32) -> (i32, i32) {
    %c0_i32 = arith.constant 0 : i32
    %c0_i32_0 = arith.constant 0 : i32
    %c0_i32_1 = arith.constant 0 : i32
    return %c0_i32, %c0_i32_0 : i32, i32
  }
  func.func @transform_3(%arg0: i32, %arg1: i32) -> (i32, i32) {
    %c0_i32 = arith.constant 0 : i32
    %c0_i32_0 = arith.constant 0 : i32
    %c0_i32_1 = arith.constant 0 : i32
    return %c0_i32, %c0_i32_0 : i32, i32
  }
  func.func @transform_4(%arg0: i32, %arg1: i32) -> (i32, i32) {
    %c0_i32 = arith.constant 0 : i32
    %c0_i32_0 = arith.constant 0 : i32
    %c0_i32_1 = arith.constant 0 : i32
    return %c0_i32, %c0_i32_0 : i32, i32
  }
  func.func @transform_5(%arg0: i32, %arg1: i32) -> (i32, i32) {
    %c0_i32 = arith.constant 0 : i32
    %c0_i32_0 = arith.constant 0 : i32
    %c0_i32_1 = arith.constant 0 : i32
    return %c0_i32, %c0_i32_0 : i32, i32
  }
  func.func @transform_6(%arg0: i32, %arg1: i32) -> (i32, i32, i32) {
    %c0_i32 = arith.constant 0 : i32
    %c0_i32_0 = arith.constant 0 : i32
    return %arg0, %arg1, %c0_i32 : i32, i32, i32
  }
  func.func @transform_7(%arg0: i32, %arg1: i32) -> (i32, i32, i32) {
    %c0_i32 = arith.constant 0 : i32
    %c0_i32_0 = arith.constant 0 : i32
    return %arg0, %arg1, %c0_i32 : i32, i32, i32
  }
}

</mosaic_0001>

<llo_original>
// kernel: tpu_custom_call.1
$region0: #{tpu_custom_call.1}
  #allocation0 [shape = 'u32[]', space=smem, size = 0x4, offset = 0x4, fixed_abs, tag = 'smem constant byte address 0x4 - core index']
  #allocation1 [shape = 'u32[144,128]{1,0:T(1,128)}', space=vmem, size = 0x12000, scoped, tag = 'internal scratch']
  %s0 = inlined_call_operand.hbm [shape: f32[2,8,32], index: 0, kind: input, shape index: {}]
  %s1 = inlined_call_operand.hbm [shape: f32[2,8,32], index: 1, kind: input, shape index: {}]
  %s2 = inlined_call_operand.hbm [shape: f32[32,32], index: 2, kind: input, shape index: {}]
  %s3 = inlined_call_operand.vmem [shape: f32[1,32], index: 3, kind: input, shape index: {}]
  %s4 = inlined_call_operand.hbm [shape: f32[32,32], index: 4, kind: input, shape index: {}]
  %s5 = inlined_call_operand.vmem [shape: f32[1,32], index: 5, kind: input, shape index: {}]
  %s6 = inlined_call_operand.hbm [shape: f32[2,8,32], index: 6, kind: output, shape index: {0}]
  %s7 = inlined_call_operand.hbm [shape: f32[2,8,32], index: 7, kind: output, shape index: {1}]
  %8 = xla_tuple %s6, %s7
  %s9 = sld [smem:[#allocation0]]
  $region81: #{tpu_custom_call.1} parent=0
    _
  %s11 = ssub.s32 1, %s9
  %s12 = scalar_select 0, %s11, %s9
  $region1: #{tpu_custom_call.1} parent=0
    #allocation2 [shape = 'u8[8192]{0}', space=vmem, size = 0x2000, scoped, tag = 'input window, operand 0']
    #allocation3 [shape = 's32[2]{0}', space=sflag, size = 0x8, scoped, tag = 'scoped memory for tpu_custom_call.1']
    #allocation4 [shape = 's32[2]{0}', space=sflag, size = 0x8, scoped, tag = 'scoped memory for tpu_custom_call.1']
    #allocation5 [shape = 'u8[8192]{0}', space=vmem, size = 0x2000, scoped, tag = 'input window, operand 1']
    #allocation6 [shape = 's32[2]{0}', space=sflag, size = 0x8, scoped, tag = 'scoped memory for tpu_custom_call.1']
    #allocation7 [shape = 'u8[16384]{0}', space=vmem, size = 0x4000, scoped, tag = 'input window, operand 2, single buffered']
    #allocation8 [shape = 'u8[16384]{0}', space=vmem, size = 0x4000, scoped, tag = 'input window, operand 4, single buffered']
    #allocation9 [shape = 's32[1]{0}', space=sflag, size = 0x4, scoped, tag = 'scoped memory for tpu_custom_call.1']
    #allocation10 [shape = 'u8[8192]{0}', space=vmem, size = 0x2000, scoped, tag = 'output window, operand 0']
    #allocation11 [shape = 'u8[8192]{0}', space=vmem, size = 0x2000, scoped, tag = 'output window, operand 1']
    #allocation12 [shape = 's32[2]{0}', space=sflag, size = 0x8, scoped, tag = 'scoped memory for tpu_custom_call.1']
    %13 = vsyncpa [#allocation3], 0
    %s14 = scalar_lea.sflag [#allocation3], 1
    %15 = vsyncpa %s14, 0
    %16 = vsyncpa [#allocation6], 0
    %s17 = scalar_lea.sflag [#allocation6], 1
    %18 = vsyncpa %s17, 0
    %19 = vsyncpa [#allocation9], 0
    %20 = vsyncpa [#allocation4], 0
    %s21 = scalar_lea.sflag [#allocation4], 1
    %22 = vsyncpa %s21, 0
    %23 = vsyncpa [#allocation12], 0
    %s24 = scalar_lea.sflag [#allocation12], 1
    %25 = vsyncpa %s24, 0
    loop: start=0, step=1, limit=4
    $region2: #{tpu_custom_call.1} parent=1 // loop_pre_header
      _
    $region3: #{tpu_custom_call.1} parent=1 // loop_header
      %s27 = sphi 0, %s31
      %p28 = scmp.ge.s32.totalorder %s27, 4
      %s34 = sphi 0, %s46
      %s35 = sphi 0, %s42
      %s36 = sphi 0, %s34
      %s37 = sphi 0, %s35
      %s38 = sphi 0, %s36
      %s39 = sphi 0, %s37
      %s51 = sphi 0, %s53
      %s54 = sphi 0, %s51
      %s55 = sphi 0, %s54
      %s71 = sphi 0, %s55
      %s79 = sphi 0, %s81
      %s82 = sphi 0, %s79
      %s83 = sphi 0, %s82
      %s99 = sphi 0, %s83
      %s103 = sphi 0, %s103
      %s105 = sphi 0, %s103
      %s106 = sphi 0, %s105
      %s120 = sphi 0, %s106
      %s124 = sphi 0, %s124
      %s126 = sphi 0, %s124
      %s127 = sphi 0, %s126
      %s141 = sphi 0, %s127
      %s145 = sphi 0, %s145
      %s147 = sphi 0, %s145
      %s148 = sphi 0, %s147
      %s162 = sphi 0, %s148
      %s166 = sphi 0, %s166
      %s168 = sphi 0, %s166
      %s169 = sphi 0, %s168
      %s183 = sphi 0, %s169
      %s191 = sphi 0, %s193
      %s194 = sphi 0, %s191
      %s195 = sphi 0, %s194
      %s211 = sphi 0, %s195
      %s219 = sphi 0, %s221
      %s222 = sphi 0, %s219
      %s223 = sphi 0, %s222
      %s239 = sphi 0, %s223
    $region4: #{tpu_custom_call.1} parent=1 // loop_header_branch
      %30 = sbr.rel (%p28) target = $region8
    $region5: #{tpu_custom_call.1} parent=1 // loop_body
      %s32 = ssub.s32 %s27, 1
      %s33 = ssub.s32 %s27, 2
      %s40 = sadd.s32 1, %s35
      %p41 = scmp.ge.s32.totalorder %s40, 1
      %s42 = scalar_select %p41, 0, %s40
      %s43 = sadd.s32 1, %s34
      %s44 = scalar_select %p41, %s43, %s34
      %p45 = scmp.ge.s32.totalorder %s44, 2
      %s46 = scalar_select %p45, 0, %s44
      %s47 = ssub.s32 %s34, %s46
      %s48 = ssub.s32 %s35, %s42
      %s49 = sor.u32 %s47, %s48
      %p50 = scmp.eq.s32.totalorder %s49, 0
      %s52 = sadd.s32 %s51, 1
      %s53 = scalar_select %p50, %s51, %s52
      %p56 = pneg %p50
      %p57 = scmp.eq.s32.totalorder %s27, 1
      %p58 = por %p56, %p57
      %p59 = scmp.ne.s32.totalorder %s51, %s54
      %p60 = scmp.eq.s32.totalorder %s27, 0
      %p61 = por %p59, %p60
      %p62 = scmp.ne.s32.totalorder %s51, %s54
      %p63 = scmp.eq.s32.totalorder %s32, 1
      %p64 = por %p62, %p63
      %p65 = scmp.ne.s32.totalorder %s54, %s55
      %p66 = scmp.eq.s32.totalorder %s32, 0
      %p67 = por %p65, %p66
      %p68 = scmp.ne.s32.totalorder %s54, %s55
      %p69 = scmp.eq.s32.totalorder %s33, 1
      %p70 = por %p68, %p69
      %p72 = scmp.ne.s32.totalorder %s55, %s71
      %p73 = scmp.eq.s32.totalorder %s33, 0
      %p74 = por %p72, %p73
      %s75 = ssub.s32 %s34, %s46
      %s76 = ssub.s32 %s35, %s42
      %s77 = sor.u32 %s75, %s76
      %p78 = scmp.eq.s32.totalorder %s77, 0
      %s80 = sadd.s32 %s79, 1
      %s81 = scalar_select %p78, %s79, %s80
      %p84 = pneg %p78
      %p85 = scmp.eq.s32.totalorder %s27, 1
      %p86 = por %p84, %p85
      %p87 = scmp.ne.s32.totalorder %s79, %s82
      %p88 = scmp.eq.s32.totalorder %s27, 0
      %p89 = por %p87, %p88
      %p90 = scmp.ne.s32.totalorder %s79, %s82
      %p91 = scmp.eq.s32.totalorder %s32, 1
      %p92 = por %p90, %p91
      %p93 = scmp.ne.s32.totalorder %s82, %s83
      %p94 = scmp.eq.s32.totalorder %s32, 0
      %p95 = por %p93, %p94
      %p96 = scmp.ne.s32.totalorder %s82, %s83
      %p97 = scmp.eq.s32.totalorder %s33, 1
      %p98 = por %p96, %p97
      %p100 = scmp.ne.s32.totalorder %s83, %s99
      %p101 = scmp.eq.s32.totalorder %s33, 0
      %p102 = por %p100, %p101
      %s104 = sadd.s32 %s103, 1
      %p107 = scmp.eq.s32.totalorder %s27, 1
      %p108 = scmp.ne.s32.totalorder %s103, %s105
      %p109 = scmp.eq.s32.totalorder %s27, 0
      %p110 = por %p108, %p109
      %p111 = scmp.ne.s32.totalorder %s103, %s105
      %p112 = scmp.eq.s32.totalorder %s32, 1
      %p113 = por %p111, %p112
      %p114 = scmp.ne.s32.totalorder %s105, %s106
      %p115 = scmp.eq.s32.totalorder %s32, 0
      %p116 = por %p114, %p115
      %p117 = scmp.ne.s32.totalorder %s105, %s106
      %p118 = scmp.eq.s32.totalorder %s33, 1
      %p119 = por %p117, %p118
      %p121 = scmp.ne.s32.totalorder %s106, %s120
      %p122 = scmp.eq.s32.totalorder %s33, 0
      %p123 = por %p121, %p122
      %s125 = sadd.s32 %s124, 1
      %p128 = scmp.eq.s32.totalorder %s27, 1
      %p129 = scmp.ne.s32.totalorder %s124, %s126
      %p130 = scmp.eq.s32.totalorder %s27, 0
      %p131 = por %p129, %p130
      %p132 = scmp.ne.s32.totalorder %s124, %s126
      %p133 = scmp.eq.s32.totalorder %s32, 1
      %p134 = por %p132, %p133
      %p135 = scmp.ne.s32.totalorder %s126, %s127
      %p136 = scmp.eq.s32.totalorder %s32, 0
      %p137 = por %p135, %p136
      %p138 = scmp.ne.s32.totalorder %s126, %s127
      %p139 = scmp.eq.s32.totalorder %s33, 1
      %p140 = por %p138, %p139
      %p142 = scmp.ne.s32.totalorder %s127, %s141
      %p143 = scmp.eq.s32.totalorder %s33, 0
      %p144 = por %p142, %p143
      %s146 = sadd.s32 %s145, 1
      %p149 = scmp.eq.s32.totalorder %s27, 1
      %p150 = scmp.ne.s32.totalorder %s145, %s147
      %p151 = scmp.eq.s32.totalorder %s27, 0
      %p152 = por %p150, %p151
      %p153 = scmp.ne.s32.totalorder %s145, %s147
      %p154 = scmp.eq.s32.totalorder %s32, 1
      %p155 = por %p153, %p154
      %p156 = scmp.ne.s32.totalorder %s147, %s148
      %p157 = scmp.eq.s32.totalorder %s32, 0
      %p158 = por %p156, %p157
      %p159 = scmp.ne.s32.totalorder %s147, %s148
      %p160 = scmp.eq.s32.totalorder %s33, 1
      %p161 = por %p159, %p160
      %p163 = scmp.ne.s32.totalorder %s148, %s162
      %p164 = scmp.eq.s32.totalorder %s33, 0
      %p165 = por %p163, %p164
      %s167 = sadd.s32 %s166, 1
      %p170 = scmp.eq.s32.totalorder %s27, 1
      %p171 = scmp.ne.s32.totalorder %s166, %s168
      %p172 = scmp.eq.s32.totalorder %s27, 0
      %p173 = por %p171, %p172
      %p174 = scmp.ne.s32.totalorder %s166, %s168
      %p175 = scmp.eq.s32.totalorder %s32, 1
      %p176 = por %p174, %p175
      %p177 = scmp.ne.s32.totalorder %s168, %s169
      %p178 = scmp.eq.s32.totalorder %s32, 0
      %p179 = por %p177, %p178
      %p180 = scmp.ne.s32.totalorder %s168, %s169
      %p181 = scmp.eq.s32.totalorder %s33, 1
      %p182 = por %p180, %p181
      %p184 = scmp.ne.s32.totalorder %s169, %s183
      %p185 = scmp.eq.s32.totalorder %s33, 0
      %p186 = por %p184, %p185
      %s187 = ssub.s32 %s34, %s46
      %s188 = ssub.s32 %s35, %s42
      %s189 = sor.u32 %s187, %s188
      %p190 = scmp.eq.s32.totalorder %s189, 0
      %s192 = sadd.s32 %s191, 1
      %s193 = scalar_select %p190, %s191, %s192
      %p196 = pneg %p190
      %p197 = scmp.eq.s32.totalorder %s27, 1
      %p198 = por %p196, %p197
      %p199 = scmp.ne.s32.totalorder %s191, %s194
      %p200 = scmp.eq.s32.totalorder %s27, 0
      %p201 = por %p199, %p200
      %p202 = scmp.ne.s32.totalorder %s191, %s194
      %p203 = scmp.eq.s32.totalorder %s32, 1
      %p204 = por %p202, %p203
      %p205 = scmp.ne.s32.totalorder %s194, %s195
      %p206 = scmp.eq.s32.totalorder %s32, 0
      %p207 = por %p205, %p206
      %p208 = scmp.ne.s32.totalorder %s194, %s195
      %p209 = scmp.eq.s32.totalorder %s33, 1
      %p210 = por %p208, %p209
      %p212 = scmp.ne.s32.totalorder %s195, %s211
      %p213 = scmp.eq.s32.totalorder %s33, 0
      %p214 = por %p212, %p213
      %s215 = ssub.s32 %s34, %s46
      %s216 = ssub.s32 %s35, %s42
      %s217 = sor.u32 %s215, %s216
      %p218 = scmp.eq.s32.totalorder %s217, 0
      %s220 = sadd.s32 %s219, 1
      %s221 = scalar_select %p218, %s219, %s220
      %p224 = pneg %p218
      %p225 = scmp.eq.s32.totalorder %s27, 1
      %p226 = por %p224, %p225
      %p227 = scmp.ne.s32.totalorder %s219, %s222
      %p228 = scmp.eq.s32.totalorder %s27, 0
      %p229 = por %p227, %p228
      %p230 = scmp.ne.s32.totalorder %s219, %s222
      %p231 = scmp.eq.s32.totalorder %s32, 1
      %p232 = por %p230, %p231
      %p233 = scmp.ne.s32.totalorder %s222, %s223
      %p234 = scmp.eq.s32.totalorder %s32, 0
      %p235 = por %p233, %p234
      %p236 = scmp.ne.s32.totalorder %s222, %s223
      %p237 = scmp.eq.s32.totalorder %s33, 1
      %p238 = por %p236, %p237
      %p240 = scmp.ne.s32.totalorder %s223, %s239
      %p241 = scmp.eq.s32.totalorder %s33, 0
      %p242 = por %p240, %p241
      %p243 = scmp.le.s32.totalorder 1, %s27
      %p244 = scmp.lt.s32.totalorder %s27, 3
      %p245 = pnand %p243, %p244
      %p246 = pneg %p245
      // Predicated region
      $region9: #{tpu_custom_call.1} parent=5 // pred_check
        _
      $region10: #{tpu_custom_call.1} parent=5 // pred_check_branch
        %248 = sbr.rel (%p245) target = $region12
      $region11: #{tpu_custom_call.1} parent=5 // pred_region
        %s249 = ssub.s32 %s27, 1
        // Predicated region
        $region13: #{tpu_custom_call.1} parent=11 // pred_check
          %p250 = pneg %p116
        $region14: #{tpu_custom_call.1} parent=11 // pred_check_branch
          %252 = sbr.rel (%p250) target = $region16
        $region15: #{tpu_custom_call.1} parent=11 // pred_region
          %s254 = ssub.s32 512, 512
          %255 = vsyncadd [#allocation6], %s254
          %s256 = sshll.u32 [#allocation7], 4
          %s257 = int_to_ptr.vmem [resolvable:$true] %s256
          %262 = dma.hbm_to_vmem [thread:$0]  %s2, 512, %s257, [#allocation6], 128, 128, 8
        $region16: #{tpu_custom_call.1} parent=11 // pred_fallthru
          _
        // Predicated region
        $region17: #{tpu_custom_call.1} parent=11 // pred_check
          %p263 = pneg %p137
        $region18: #{tpu_custom_call.1} parent=11 // pred_check_branch
          %265 = sbr.rel (%p263) target = $region20
        $region19: #{tpu_custom_call.1} parent=11 // pred_region
          _
        $region20: #{tpu_custom_call.1} parent=11 // pred_fallthru
          _
        // Predicated region
        $region21: #{tpu_custom_call.1} parent=11 // pred_check
          %p266 = pneg %p158
        $region22: #{tpu_custom_call.1} parent=11 // pred_check_branch
          %268 = sbr.rel (%p266) target = $region24
        $region23: #{tpu_custom_call.1} parent=11 // pred_region
          %s270 = ssub.s32 512, 512
          %271 = vsyncadd [#allocation9], %s270
          %s272 = sshll.u32 [#allocation8], 4
          %s273 = int_to_ptr.vmem [resolvable:$true] %s272
          %278 = dma.hbm_to_vmem [thread:$0]  %s4, 512, %s273, [#allocation9], 128, 128, 8
        $region24: #{tpu_custom_call.1} parent=11 // pred_fallthru
          _
        // Predicated region
        $region25: #{tpu_custom_call.1} parent=11 // pred_check
          %p279 = pneg %p179
        $region26: #{tpu_custom_call.1} parent=11 // pred_check_branch
          %281 = sbr.rel (%p279) target = $region28
        $region27: #{tpu_custom_call.1} parent=11 // pred_region
          _
        $region28: #{tpu_custom_call.1} parent=11 // pred_fallthru
          _
      $region12: #{tpu_custom_call.1} parent=5 // pred_fallthru
        _
      %p282 = scmp.lt.s32.totalorder %s27, 2
      // Predicated region
      $region29: #{tpu_custom_call.1} parent=5 // pred_check
        %p283 = pneg %p282
      $region30: #{tpu_custom_call.1} parent=5 // pred_check_branch
        %285 = sbr.rel (%p283) target = $region32
      $region31: #{tpu_custom_call.1} parent=5 // pred_region
        // Predicated region
        $region33: #{tpu_custom_call.1} parent=31 // pred_check
          %p286 = pneg %p61
        $region34: #{tpu_custom_call.1} parent=31 // pred_check_branch
          %288 = sbr.rel (%p286) target = $region36
        $region35: #{tpu_custom_call.1} parent=31 // pred_region
          %s289 = sand.u32 %s51, 1
          %s290 = scalar_lea.sflag [#allocation3], %s289
          %s291 = sand.u32 %s51, 1
          %s292 = smul.addr %s291, 8
          %s293 = scalar_lea.vmem [#allocation2], %s292
          %s295 = ssub.s32 128, 128
          %296 = vsyncadd %s290, %s295
          %s297 = sadd.s32 %s35, %s34
          %s298 = smul.addr %s297, 128
          %s299 = scalar_lea.hbm %s0, %s298
          %s301 = sshll.u32 %s293, 4
          %s302 = int_to_ptr.vmem [resolvable:$true] %s301
          %304 = dma.hbm_to_vmem [thread:$0]  %s299, 128, %s302, %s290
        $region36: #{tpu_custom_call.1} parent=31 // pred_fallthru
          _
        // Predicated region
        $region37: #{tpu_custom_call.1} parent=31 // pred_check
          %p305 = pneg %p89
        $region38: #{tpu_custom_call.1} parent=31 // pred_check_branch
          %307 = sbr.rel (%p305) target = $region40
        $region39: #{tpu_custom_call.1} parent=31 // pred_region
          %s308 = sand.u32 %s27, 1
          %s309 = scalar_lea.sflag [#allocation6], %s308
          %s310 = sand.u32 %s79, 1
          %s311 = smul.addr %s310, 8
          %s312 = scalar_lea.vmem [#allocation5], %s311
          %s314 = ssub.s32 128, 128
          %315 = vsyncadd %s309, %s314
          %s316 = sadd.s32 %s35, %s34
          %s317 = smul.addr %s316, 128
          %s318 = scalar_lea.hbm %s1, %s317
          %s320 = sshll.u32 %s312, 4
          %s321 = int_to_ptr.vmem [resolvable:$true] %s320
          %323 = dma.hbm_to_vmem [thread:$0]  %s318, 128, %s321, %s309
        $region40: #{tpu_custom_call.1} parent=31 // pred_fallthru
          _
      $region32: #{tpu_custom_call.1} parent=5 // pred_fallthru
        _
      %p324 = scmp.le.s32.totalorder 1, %s27
      %p325 = scmp.lt.s32.totalorder %s27, 3
      %p326 = pnand %p324, %p325
      %p327 = pneg %p326
      // Predicated region
      $region41: #{tpu_custom_call.1} parent=5 // pred_check
        _
      $region42: #{tpu_custom_call.1} parent=5 // pred_check_branch
        %329 = sbr.rel (%p326) target = $region44
      $region43: #{tpu_custom_call.1} parent=5 // pred_region
        %s330 = ssub.s32 %s27, 1
        %s331 = sand.u32 %s54, 1
        %s332 = scalar_lea.sflag [#allocation3], %s331
        %s333 = sand.u32 %s54, 1
        %s334 = smul.addr %s333, 8
        %s335 = scalar_lea.vmem [#allocation2], %s334
        // Predicated region
        $region45: #{tpu_custom_call.1} parent=43 // pred_check
          %p336 = pneg %p67
        $region46: #{tpu_custom_call.1} parent=43 // pred_check_branch
          %338 = sbr.rel (%p336) target = $region48
        $region47: #{tpu_custom_call.1} parent=43 // pred_region
          %339 = dma.done %s332, 128
        $region48: #{tpu_custom_call.1} parent=43 // pred_fallthru
          _
        %s340 = sand.u32 %s32, 1
        %s341 = scalar_lea.sflag [#allocation6], %s340
        %s342 = sand.u32 %s82, 1
        %s343 = smul.addr %s342, 8
        %s344 = scalar_lea.vmem [#allocation5], %s343
        // Predicated region
        $region49: #{tpu_custom_call.1} parent=43 // pred_check
          %p345 = pneg %p95
        $region50: #{tpu_custom_call.1} parent=43 // pred_check_branch
          %347 = sbr.rel (%p345) target = $region52
        $region51: #{tpu_custom_call.1} parent=43 // pred_region
          %348 = dma.done %s341, 128
        $region52: #{tpu_custom_call.1} parent=43 // pred_fallthru
          _
        // Predicated region
        $region53: #{tpu_custom_call.1} parent=43 // pred_check
          %p349 = pneg %p116
        $region54: #{tpu_custom_call.1} parent=43 // pred_check_branch
          %351 = sbr.rel (%p349) target = $region56
        $region55: #{tpu_custom_call.1} parent=43 // pred_region
          %352 = dma.done [#allocation6], 512
        $region56: #{tpu_custom_call.1} parent=43 // pred_fallthru
          _
        // Predicated region
        $region57: #{tpu_custom_call.1} parent=43 // pred_check
          %p353 = pneg %p158
        $region58: #{tpu_custom_call.1} parent=43 // pred_check_branch
          %355 = sbr.rel (%p353) target = $region60
        $region59: #{tpu_custom_call.1} parent=43 // pred_region
          %356 = dma.done [#allocation9], 512
        $region60: #{tpu_custom_call.1} parent=43 // pred_fallthru
          _
        %s357 = sand.u32 %s54, 1
        %s358 = scalar_lea.sflag [#allocation3], %s357
        %s359 = sand.u32 %s54, 1
        %s360 = smul.addr %s359, 8
        %s361 = scalar_lea.vmem [#allocation2], %s360
        %p362 = pneg %p67
        %p363 = pneg %p64
        %s364 = sand.u32 %s32, 1
        %s365 = scalar_lea.sflag [#allocation6], %s364
        %s366 = sand.u32 %s82, 1
        %s367 = smul.addr %s366, 8
        %s368 = scalar_lea.vmem [#allocation5], %s367
        %p369 = pneg %p95
        %p370 = pneg %p92
        %p371 = pneg %p116
        %p372 = pneg %p113
        %p373 = pneg %p137
        %p374 = pneg %p134
        %p375 = pneg %p158
        %p376 = pneg %p155
        %p377 = pneg %p179
        %p378 = pneg %p176
        %p379 = pneg %p207
        %p380 = pneg %p204
        %s381 = sand.u32 %s194, 1
        %s382 = scalar_lea.sflag [#allocation4], %s381
        %s383 = sand.u32 %s194, 1
        %s384 = smul.addr %s383, 8
        %s385 = scalar_lea.vmem [#allocation10], %s384
        %p386 = pneg %p235
        %p387 = pneg %p232
        %s388 = sand.u32 %s222, 1
        %s389 = scalar_lea.sflag [#allocation12], %s388
        %s390 = sand.u32 %s222, 1
        %s391 = smul.addr %s390, 8
        %s392 = scalar_lea.vmem [#allocation11], %s391
        %v393 = vld [vmem:[%s335] sm:$0xff]
        %v394 = vld [vmem:[%s344] sm:$0xff]
        %v395 = vld [vmem:[#allocation7] sm:$0xff]
        %v396 = vld [vmem:[#allocation7 + $0x8] sm:$0xff]
        %v397 = vld [vmem:[#allocation7 + $0x10] sm:$0xff]
        %v398 = vld [vmem:[#allocation7 + $0x18] sm:$0xff]
        %v399 = vld [vmem:[%s3] sm:$0x1]
        %v401 = vlaneseq
        %v402 = vshrl.u32 %v401, 7
        %v403 = vsub.s32 0, %v402
        %v404 = vrot.slane %v399, %v403
        %vm406 = vcmask 261120
        %v408 = vsel %vm406, %v393, 0
        %410 = vmatprep.subr.mxu0 0.0
        %411 = vmatpush1.msra.mxu0 %v395
        %412 = vmatprep.subr.mxu0 0.0
        %413 = vmatpush1.msra.mxu0 %v396
        %414 = vmatprep.subr.mxu0 0.0
        %415 = vmatpush1.msra.mxu0 %v397
        %416 = vmatprep.subr.mxu0 0.0
        %417 = vmatpush1.msra.mxu0 %v398
        %418 = vmatprep.subr.mxu0 0.0
        %419 = vmatpush1.msra.mxu0 0.0
        %420 = vmatprep.subr.mxu0 0.0
        %421 = vmatpush1.msra.mxu0 0.0
        %422 = vmatprep.subr.mxu0 0.0
        %423 = vmatpush1.msra.mxu0 0.0
        %424 = vmatprep.subr.mxu0 0.0
        %425 = vmatpush1.msra.mxu0 0.0
        %426 = vmatprep.subr.mxu0 0.0
        %427 = vmatpush1.msra.mxu0 0.0
        %428 = vmatprep.subr.mxu0 0.0
        %429 = vmatpush1.msra.mxu0 0.0
        %430 = vmatprep.subr.mxu0 0.0
        %431 = vmatpush1.msra.mxu0 0.0
        %432 = vmatprep.subr.mxu0 0.0
        %433 = vmatpush1.msra.mxu0 0.0
        %434 = vmatprep.subr.mxu0 0.0
        %435 = vmatpush1.msra.mxu0 0.0
        %436 = vmatprep.subr.mxu0 0.0
        %437 = vmatpush1.msra.mxu0 0.0
        %438 = vmatprep.subr.mxu0 0.0
        %439 = vmatpush1.msra.mxu0 0.0
        %440 = vmatprep.subr.mxu0 0.0
        %441 = vmatpush1.msra.mxu0 0.0
        %442 = vmatprep.subr.mxu0 0.0
        %443 = vmatpush1.msra.mxu0 0.0
        %444 = vmatprep.subr.mxu0 0.0
        %445 = vmatpush1.msra.mxu0 0.0
        %446 = vmatprep.subr.mxu0 0.0
        %447 = vmatpush1.msra.mxu0 0.0
        %448 = vmatprep.subr.mxu0 0.0
        %449 = vmatpush1.msra.mxu0 0.0
        %450 = vmatprep.subr.mxu0 0.0
        %451 = vmatpush1.msra.mxu0 0.0
        %452 = vmatprep.subr.mxu0 0.0
        %453 = vmatpush1.msra.mxu0 0.0
        %454 = vmatprep.subr.mxu0 0.0
        %455 = vmatpush1.msra.mxu0 0.0
        %456 = vmatprep.subr.mxu0 0.0
        %457 = vmatpush1.msra.mxu0 0.0
        %458 = vmatprep.subr.mxu0 0.0
        %459 = vmatpush1.msra.mxu0 0.0
        %460 = vmatprep.subr.mxu0 0.0
        %461 = vmatpush1.msra.mxu0 0.0
        %462 = vmatprep.subr.mxu0 0.0
        %463 = vmatpush1.msra.mxu0 0.0
        %464 = vmatprep.subr.mxu0 0.0
        %465 = vmatpush1.msra.mxu0 0.0
        %466 = vmatprep.subr.mxu0 0.0
        %467 = vmatpush1.msra.mxu0 0.0
        %468 = vmatprep.subr.mxu0 0.0
        %469 = vmatpush1.msra.mxu0 0.0
        %470 = vmatprep.subr.mxu0 0.0
        %471 = vmatpush1.msra.mxu0 0.0
        %472 = vmatprep.subr.mxu0 0.0
        %473 = vmatpush1.msra.mxu0 0.0
        %474 = vmatprep.mubr.f32.mxu0 0.0
        %475 = vmatmul.mubr.f32.gmra.mrb[0].mxu0 %v408
        %v476 = vpop.f32.mrb[0].mxu0
        %v477 = vadd.f32 %v404, %v476
        %v478 = vpop.f32.mrb[0].mxu0
        %479 = vdwg.mxu0
        %v480 = vld [vmem:[#allocation8] sm:$0xff]
        %v481 = vld [vmem:[#allocation8 + $0x8] sm:$0xff]
        %v482 = vld [vmem:[#allocation8 + $0x10] sm:$0xff]
        %v483 = vld [vmem:[#allocation8 + $0x18] sm:$0xff]
        %v484 = vld [vmem:[%s5] sm:$0x1]
        %v486 = vlaneseq
        %v487 = vshrl.u32 %v486, 7
        %v488 = vsub.s32 0, %v487
        %v489 = vrot.slane %v484, %v488
        %v492 = vsel %vm406, %v394, 0
        %494 = vmatprep.subr.mxu0 0.0
        %495 = vmatpush1.msra.mxu0 %v480
        %496 = vmatprep.subr.mxu0 0.0
        %497 = vmatpush1.msra.mxu0 %v481
        %498 = vmatprep.subr.mxu0 0.0
        %499 = vmatpush1.msra.mxu0 %v482
        %500 = vmatprep.subr.mxu0 0.0
        %501 = vmatpush1.msra.mxu0 %v483
        %502 = vmatprep.subr.mxu0 0.0
        %503 = vmatpush1.msra.mxu0 0.0
        %504 = vmatprep.subr.mxu0 0.0
        %505 = vmatpush1.msra.mxu0 0.0
        %506 = vmatprep.subr.mxu0 0.0
        %507 = vmatpush1.msra.mxu0 0.0
        %508 = vmatprep.subr.mxu0 0.0
        %509 = vmatpush1.msra.mxu0 0.0
        %510 = vmatprep.subr.mxu0 0.0
        %511 = vmatpush1.msra.mxu0 0.0
        %512 = vmatprep.subr.mxu0 0.0
        %513 = vmatpush1.msra.mxu0 0.0
        %514 = vmatprep.subr.mxu0 0.0
        %515 = vmatpush1.msra.mxu0 0.0
        %516 = vmatprep.subr.mxu0 0.0
        %517 = vmatpush1.msra.mxu0 0.0
        %518 = vmatprep.subr.mxu0 0.0
        %519 = vmatpush1.msra.mxu0 0.0
        %520 = vmatprep.subr.mxu0 0.0
        %521 = vmatpush1.msra.mxu0 0.0
        %522 = vmatprep.subr.mxu0 0.0
        %523 = vmatpush1.msra.mxu0 0.0
        %524 = vmatprep.subr.mxu0 0.0
        %525 = vmatpush1.msra.mxu0 0.0
        %526 = vmatprep.subr.mxu0 0.0
        %527 = vmatpush1.msra.mxu0 0.0
        %528 = vmatprep.subr.mxu0 0.0
        %529 = vmatpush1.msra.mxu0 0.0
        %530 = vmatprep.subr.mxu0 0.0
        %531 = vmatpush1.msra.mxu0 0.0
        %532 = vmatprep.subr.mxu0 0.0
        %533 = vmatpush1.msra.mxu0 0.0
        %534 = vmatprep.subr.mxu0 0.0
        %535 = vmatpush1.msra.mxu0 0.0
        %536 = vmatprep.subr.mxu0 0.0
        %537 = vmatpush1.msra.mxu0 0.0
        %538 = vmatprep.subr.mxu0 0.0
        %539 = vmatpush1.msra.mxu0 0.0
        %540 = vmatprep.subr.mxu0 0.0
        %541 = vmatpush1.msra.mxu0 0.0
        %542 = vmatprep.subr.mxu0 0.0
        %543 = vmatpush1.msra.mxu0 0.0
        %544 = vmatprep.subr.mxu0 0.0
        %545 = vmatpush1.msra.mxu0 0.0
        %546 = vmatprep.subr.mxu0 0.0
        %547 = vmatpush1.msra.mxu0 0.0
        %548 = vmatprep.subr.mxu0 0.0
        %549 = vmatpush1.msra.mxu0 0.0
        %550 = vmatprep.subr.mxu0 0.0
        %551 = vmatpush1.msra.mxu0 0.0
        %552 = vmatprep.subr.mxu0 0.0
        %553 = vmatpush1.msra.mxu0 0.0
        %554 = vmatprep.subr.mxu0 0.0
        %555 = vmatpush1.msra.mxu0 0.0
        %556 = vmatprep.subr.mxu0 0.0
        %557 = vmatpush1.msra.mxu0 0.0
        %558 = vmatprep.mubr.f32.mxu0 0.0
        %559 = vmatmul.mubr.f32.gmra.mrb[0].mxu0 %v492
        %v560 = vpop.f32.mrb[0].mxu0
        %v561 = vadd.f32 %v489, %v560
        %v562 = vpop.f32.mrb[0].mxu0
        %563 = vdwg.mxu0
        %564 = vst.msk [vmem:[%s385] sm:$0xff] %vm406, %v477
        %565 = vst.msk [vmem:[%s392] sm:$0xff] %vm406, %v561
        %s566 = sand.u32 %s194, 1
        %s567 = scalar_lea.sflag [#allocation4], %s566
        %s568 = sand.u32 %s194, 1
        %s569 = smul.addr %s568, 8
        %s570 = scalar_lea.vmem [#allocation10], %s569
        %s571 = sand.u32 %s222, 1
        %s572 = scalar_lea.sflag [#allocation12], %s571
        %s573 = sand.u32 %s222, 1
        %s574 = smul.addr %s573, 8
        %s575 = scalar_lea.vmem [#allocation11], %s574
        // Predicated region
        $region61: #{tpu_custom_call.1} parent=43 // pred_check
          %p576 = pneg %p204
        $region62: #{tpu_custom_call.1} parent=43 // pred_check_branch
          %578 = sbr.rel (%p576) target = $region64
        $region63: #{tpu_custom_call.1} parent=43 // pred_region
          %s580 = ssub.s32 128, 128
          %581 = vsyncadd %s567, %s580
          %s582 = sadd.s32 %s37, %s36
          %s583 = smul.addr %s582, 128
          %s584 = scalar_lea.hbm %s6, %s583
          %s586 = sshll.u32 %s570, 4
          %s587 = int_to_ptr.vmem [resolvable:$true] %s586
          %589 = dma.vmem_to_hbm [thread:$0]  %s587, 128, %s584, %s567
        $region64: #{tpu_custom_call.1} parent=43 // pred_fallthru
          _
        // Predicated region
        $region65: #{tpu_custom_call.1} parent=43 // pred_check
          %p590 = pneg %p232
        $region66: #{tpu_custom_call.1} parent=43 // pred_check_branch
          %592 = sbr.rel (%p590) target = $region68
        $region67: #{tpu_custom_call.1} parent=43 // pred_region
          %s594 = ssub.s32 128, 128
          %595 = vsyncadd %s572, %s594
          %s596 = sadd.s32 %s37, %s36
          %s597 = smul.addr %s596, 128
          %s598 = scalar_lea.hbm %s7, %s597
          %s600 = sshll.u32 %s575, 4
          %s601 = int_to_ptr.vmem [resolvable:$true] %s600
          %603 = dma.vmem_to_hbm [thread:$0]  %s601, 128, %s598, %s572
        $region68: #{tpu_custom_call.1} parent=43 // pred_fallthru
          _
      $region44: #{tpu_custom_call.1} parent=5 // pred_fallthru
        _
      %p604 = scmp.le.s32.totalorder 2, %s27
      // Predicated region
      $region69: #{tpu_custom_call.1} parent=5 // pred_check
        %p605 = pneg %p604
      $region70: #{tpu_custom_call.1} parent=5 // pred_check_branch
        %607 = sbr.rel (%p605) target = $region72
      $region71: #{tpu_custom_call.1} parent=5 // pred_region
        %s608 = ssub.s32 %s27, 2
        // Predicated region
        $region73: #{tpu_custom_call.1} parent=71 // pred_check
          %p609 = pneg %p210
        $region74: #{tpu_custom_call.1} parent=71 // pred_check_branch
          %611 = sbr.rel (%p609) target = $region76
        $region75: #{tpu_custom_call.1} parent=71 // pred_region
          %s612 = sand.u32 %s195, 1
          %s613 = scalar_lea.sflag [#allocation4], %s612
          %s614 = sand.u32 %s195, 1
          %s615 = smul.addr %s614, 8
          %s616 = scalar_lea.vmem [#allocation10], %s615
          %617 = dma.done %s613, 128
        $region76: #{tpu_custom_call.1} parent=71 // pred_fallthru
          _
        // Predicated region
        $region77: #{tpu_custom_call.1} parent=71 // pred_check
          %p618 = pneg %p238
        $region78: #{tpu_custom_call.1} parent=71 // pred_check_branch
          %620 = sbr.rel (%p618) target = $region80
        $region79: #{tpu_custom_call.1} parent=71 // pred_region
          %s621 = sand.u32 %s223, 1
          %s622 = scalar_lea.sflag [#allocation12], %s621
          %s623 = sand.u32 %s223, 1
          %s624 = smul.addr %s623, 8
          %s625 = scalar_lea.vmem [#allocation11], %s624
          %626 = dma.done %s622, 128
        $region80: #{tpu_custom_call.1} parent=71 // pred_fallthru
          _
      $region72: #{tpu_custom_call.1} parent=5 // pred_fallthru
        _
    $region6: #{tpu_custom_call.1} parent=1 // loop_footer
      %s31 = sadd.s32 1, %s27
    $region7: #{tpu_custom_call.1} parent=1 // loop_footer_branch
      %26 = sbr.rel target = $region3
    $region8: #{tpu_custom_call.1} parent=1 // loop_exit
      _
    %627 = vsyncpa [#allocation3], 1
    %s628 = scalar_lea.sflag [#allocation3], 1
    %629 = vsyncpa %s628, 1
    %630 = vsyncpa [#allocation6], 1
    %s631 = scalar_lea.sflag [#allocation6], 1
    %632 = vsyncpa %s631, 1
    %633 = vsyncpa [#allocation9], 1
    %634 = vsyncpa [#allocation4], 1
    %s635 = scalar_lea.sflag [#allocation4], 1
    %636 = vsyncpa %s635, 1
    %637 = vsyncpa [#allocation12], 1
    %s638 = scalar_lea.sflag [#allocation12], 1
    %639 = vsyncpa %s638, 1

</llo_original>
